<compile_context>
chip_gen: v7x
topology: tpu7x:2x2x1
jax: 0.10.0
libtpu: 0.0.40
codegen_flags: <defaults>
</compile_context>

<pallas_src>
import functools

import jax
import jax.numpy as jnp
from jax.experimental import pallas as pl
from jax.experimental.pallas import tpu as pltpu


def _round_up(x: int, m: int) -> int:
    return (x + m - 1) // m * m


def _cdiv(a: int, b: int) -> int:
    return (a + b - 1) // b


def _fused_head_kernel(x_ref, w_ref, b_ref, o_ref):
    # x_ref: [TR, H]   row tile of flattened features (possibly partial last tile)
    # w_ref: [H, LP]   fused weight (lane-padded), VMEM-resident across steps
    # b_ref: [1, LP]   fused bias (f32, lane-padded), VMEM-resident
    # o_ref: [TR, LP]  lane-dense output tile
    x = x_ref[...]
    w = w_ref[...]
    if x.dtype != w.dtype:
        # In-kernel cast (e.g. f32 activations -> bf16 matmul operand).  Doing
        # this here avoids a separate wrapper-side astype pass over HBM.
        x = x.astype(w.dtype)
    acc = jnp.dot(x, w, preferred_element_type=jnp.float32)
    acc = acc + b_ref[...]
    o_ref[...] = acc.astype(o_ref.dtype)


def _resident_spec(shape):
    """BlockSpec for a block whose index never changes (VMEM-resident).

    Uses single buffering (pl.Buffered(1)) when the installed jax supports the
    `pipeline_mode` kwarg, saving the redundant second pipeline buffer.
    """
    idx_map = lambda i: (0,) * len(shape)
    if hasattr(pl, "Buffered"):
        try:
            return pl.BlockSpec(shape, idx_map, pipeline_mode=pl.Buffered(1))
        except TypeError:
            pass
    return pl.BlockSpec(shape, idx_map)


def prepare_head_params(w_dense, b_dense, w_out, b_out, *,
                        compute_dtype=jnp.bfloat16):
    """One-time (outside the hot path) weight preparation.

    w_dense: [H, H]  (PyTorch layout: out_features x in_features)
    b_dense: [H]
    w_out:   [L, H]
    b_out:   [L]

    Returns (w_fused_padded [H, LP], b_fused_padded [1, LP] f32, num_labels).
    Exact only in eval mode (dropout = identity, no inter-layer activation).
    bf16 is the default matmul-operand dtype (f32 accumulation in-kernel);
    pass compute_dtype=jnp.float32 for a fully f32 path.
    """
    num_labels = w_out.shape[0]

    # out = x @ Wd^T @ Wo^T + (bd @ Wo^T + bo)  ==  x @ W_fused + b_fused
    w_fused = jnp.transpose(
        jnp.dot(w_out.astype(jnp.float32), w_dense.astype(jnp.float32))
    )  # [H, L]
    b_fused = (
        jnp.dot(b_dense.astype(jnp.float32), jnp.transpose(w_out).astype(jnp.float32))
        + b_out.astype(jnp.float32)
    )  # [L]

    # Lane-pad the label axis to exactly a multiple of 128 (128 for typical L)
    # for unmasked lane-dense stores.  Zero columns contribute zero output.
    lp = _round_up(max(num_labels, 1), 128)
    if lp != num_labels:
        w_fused = jnp.pad(w_fused, ((0, 0), (0, lp - num_labels)))
        b_fused = jnp.pad(b_fused, ((0, lp - num_labels),))

    if compute_dtype is not None:
        w_fused = w_fused.astype(compute_dtype)
    b_fused = b_fused.reshape(1, lp).astype(jnp.float32)  # bias stays f32

    return w_fused, b_fused, num_labels


@functools.partial(jax.jit,
                   static_argnames=("num_labels", "block_rows", "return_padded"))
def deberta_classification_head(features, w_fused, b_fused, num_labels,
                                *, block_rows=1024, return_padded=False):
    """features: [batch, seq, hidden] or [batch, hidden].

    w_fused / b_fused come from `prepare_head_params` (fused + lane-padded).
    If `return_padded` is True the lane-padded [..., 128] logits are returned
    (columns >= num_labels are exactly the padded-zero-weight columns), letting
    the consumer slice/mask lazily instead of paying a separate HBM pass.
    """
    orig_shape = features.shape
    hidden = orig_shape[-1]
    lp = w_fused.shape[1]
    out_dtype = features.dtype

    x2d = features.reshape(-1, hidden)   # metadata-only for contiguous input
    rows = x2d.shape[0]

    # Row tile: multiple of 8 (block (8,128) rule; last partial block is masked
    # by Pallas -- no wrapper-side row padding pass).
    tr = min(block_rows, _round_up(rows, 8))
    tr = _round_up(tr, 8)
    # v7x has 2 TensorCores: make sure the "parallel" axis has >= 2 steps.
    if rows > 8 and _cdiv(rows, tr) < 2:
        tr = _round_up(_cdiv(rows, 2), 8)
    grid = (_cdiv(rows, tr),)

    out = pl.pallas_call(
        _fused_head_kernel,
        out_shape=jax.ShapeDtypeStruct((rows, lp), out_dtype),
        grid_spec=pltpu.PrefetchScalarGridSpec(
            num_scalar_prefetch=0,
            grid=grid,
            in_specs=[
                # x: streamed row tiles (double-buffered by the pipeline).
                pl.BlockSpec((tr, hidden), lambda i: (i, 0)),
                # fused weight / bias: constant block -> VMEM-resident,
                # single-buffered where supported.
                _resident_spec((hidden, lp)),
                _resident_spec((1, lp)),
            ],
            out_specs=pl.BlockSpec((tr, lp), lambda i: (i, 0)),
        ),
        compiler_params=pltpu.CompilerParams(
            # Row tiles are independent -> shard across both TCs on v7x.
            dimension_semantics=("parallel",),
            # Explicit scoped-VMEM budget (v5e default is only 16 MiB).
            vmem_limit_bytes=32 * 1024 * 1024,
        ),
    )(x2d, w_fused, b_fused)

    if return_padded:
        return out.reshape(orig_shape[:-1] + (lp,))
    out = out[:, :num_labels]
    return out.reshape(orig_shape[:-1] + (num_labels,))


if __name__ == "__main__":
    # Small, deterministic config: batch=2, seq=8, hidden=32, num_labels=4.
    batch, seq, hidden, num_labels = 2, 8, 32, 4

    key = jax.random.PRNGKey(0)
    k_x, k_w1, k_b1, k_w2, k_b2 = jax.random.split(key, 5)

    features = jax.random.normal(k_x, (batch, seq, hidden), dtype=jnp.float32)
    # nn.Linear(hidden, hidden): weight [H, H], bias [H]
    w_dense = jax.random.normal(k_w1, (hidden, hidden), dtype=jnp.float32) * 0.05
    b_dense = jax.random.normal(k_b1, (hidden,), dtype=jnp.float32) * 0.05
    # nn.Linear(hidden, num_labels): weight [L, H], bias [L]
    w_out = jax.random.normal(k_w2, (num_labels, hidden), dtype=jnp.float32) * 0.05
    b_out = jax.random.normal(k_b2, (num_labels,), dtype=jnp.float32) * 0.05

    # Pure-JAX reference (eval-mode dropout = identity).
    ref = (features @ w_dense.T + b_dense) @ w_out.T + b_out

    # ---- f32 compute path (exact) ----
    w_f, b_f, nl = prepare_head_params(w_dense, b_dense, w_out, b_out,
                                       compute_dtype=jnp.float32)
    out = deberta_classification_head(features, w_f, b_f, nl)
    out = jax.block_until_ready(out)
    assert out.shape == (batch, seq, num_labels), out.shape
    assert jnp.allclose(out, ref, atol=1e-4, rtol=1e-4), "f32 mismatch vs reference"

    # ---- default bf16 compute path (f32 activations cast in-kernel) ----
    w_fb, b_fb, _ = prepare_head_params(w_dense, b_dense, w_out, b_out)
    out_bf16 = deberta_classification_head(features, w_fb, b_fb, nl)
    out_bf16 = jax.block_until_ready(out_bf16)
    assert out_bf16.shape == (batch, seq, num_labels), out_bf16.shape
    assert jnp.allclose(out_bf16, ref, atol=5e-2, rtol=5e-2), "bf16 mismatch vs reference"

    # ---- lane-padded output variant (no post-kernel slice pass) ----
    out_pad = deberta_classification_head(features, w_fb, b_fb, nl,
                                          return_padded=True)
    out_pad = jax.block_until_ready(out_pad)
    assert out_pad.shape == (batch, seq, 128), out_pad.shape
    assert jnp.allclose(out_pad[..., :num_labels], ref, atol=5e-2, rtol=5e-2)

    # ---- 2-D (CLS-token) input, rows < 8: exercises the masked partial block ----
    feats_cls = features[:, 0, :]                      # [batch, hidden]
    ref_cls = (feats_cls @ w_dense.T + b_dense) @ w_out.T + b_out
    out_cls = deberta_classification_head(feats_cls, w_f, b_f, nl)
    out_cls = jax.block_until_ready(out_cls)
    assert out_cls.shape == (batch, num_labels), out_cls.shape
    assert jnp.allclose(out_cls, ref_cls, atol=1e-4, rtol=1e-4), "CLS mismatch"

    print("KERNEL_OK")
</pallas_src>

<mosaic_0001>
module attributes {stable_mosaic.version = 11 : i64} {
  func.func @_fused_head_kernel(%arg0: i32, %arg1: memref<8x32xf32, #tpu.memory_space<vmem>>, %arg2: memref<32x128xf32, #tpu.memory_space<vmem>>, %arg3: memref<1x128xf32, #tpu.memory_space<vmem>>, %arg4: memref<8x128xf32, #tpu.memory_space<vmem>>) attributes {dimension_semantics = [#tpu.dimension_semantics<parallel>], iteration_bounds = array<i64: 2>, scalar_prefetch = 0 : i64, scratch_operands = 0 : i64, tpu.core_type = #tpu.core_type<tc>, window_params = [{transform_indices = @transform_0, window_bounds = array<i64: 8, 32>}, {pipeline_mode = #tpu.pipeline_mode<synchronous>, transform_indices = @transform_1, window_bounds = array<i64: 32, 128>}, {pipeline_mode = #tpu.pipeline_mode<synchronous>, transform_indices = @transform_2, window_bounds = array<i64: 1, 128>}, {transform_indices = @transform_3, window_bounds = array<i64: 8, 128>}]} {
    %c0 = arith.constant 0 : index
    %c0_0 = arith.constant 0 : index
    %0 = vector.load %arg1[%c0, %c0_0] : memref<8x32xf32, #tpu.memory_space<vmem>>, vector<8x32xf32>
    %c0_1 = arith.constant 0 : index
    %c0_2 = arith.constant 0 : index
    %1 = vector.load %arg2[%c0_1, %c0_2] : memref<32x128xf32, #tpu.memory_space<vmem>>, vector<32x128xf32>
    %cst = arith.constant dense<0.000000e+00> : vector<8x128xf32>
    %2 = tpu.matmul %0, %1, %cst {dimension_numbers = #tpu.dot_dimension_numbers<[1], [0], [0], [1], [0, 0, 1, 1], [], []>} : vector<8x32xf32>, vector<32x128xf32>, vector<8x128xf32> -> vector<8x128xf32>
    %c0_3 = arith.constant 0 : index
    %c0_4 = arith.constant 0 : index
    %3 = vector.load %arg3[%c0_3, %c0_4] : memref<1x128xf32, #tpu.memory_space<vmem>>, vector<1x128xf32>
    %4 = vector.broadcast %3 : vector<1x128xf32> to vector<8x128xf32>
    %5 = arith.addf %2, %4 : vector<8x128xf32>
    %c0_5 = arith.constant 0 : index
    %c0_6 = arith.constant 0 : index
    %6 = vector.load %arg4[%c0_5, %c0_6] : memref<8x128xf32, #tpu.memory_space<vmem>>, vector<8x128xf32>
    tpu.vector_store %arg4[%c0_5, %c0_6], %5 {strides = array<i32>} : memref<8x128xf32, #tpu.memory_space<vmem>>, vector<8x128xf32>,
    return
  }
  func.func @transform_0(%arg0: i32) -> (i32, i32) {
    %c0_i32 = arith.constant 0 : i32
    %c0_i32_0 = arith.constant 0 : i32
    return %arg0, %c0_i32 : i32, i32
  }
  func.func @transform_1(%arg0: i32) -> (i32, i32) {
    %c0_i32 = arith.constant 0 : i32
    %c0_i32_0 = arith.constant 0 : i32
    %c0_i32_1 = arith.constant 0 : i32
    return %c0_i32, %c0_i32_0 : i32, i32
  }
  func.func @transform_2(%arg0: i32) -> (i32, i32) {
    %c0_i32 = arith.constant 0 : i32
    %c0_i32_0 = arith.constant 0 : i32
    %c0_i32_1 = arith.constant 0 : i32
    return %c0_i32, %c0_i32_0 : i32, i32
  }
  func.func @transform_3(%arg0: i32) -> (i32, i32) {
    %c0_i32 = arith.constant 0 : i32
    %c0_i32_0 = arith.constant 0 : i32
    return %arg0, %c0_i32 : i32, i32
  }
}

</mosaic_0001>

<llo_original>
// kernel: deberta_classification_head.1
$region0: #{deberta_classification_head.1}
  #allocation0 [shape = 'u32[]', space=smem, size = 0x4, offset = 0x4, fixed_abs, tag = 'smem constant byte address 0x4 - core index']
  #allocation1 [shape = 'u32[144,128]{1,0:T(1,128)}', space=vmem, size = 0x12000, scoped, tag = 'internal scratch']
  %s0 = inlined_call_operand.hbm [shape: f32[16,32], index: 0, kind: input, shape index: {}]
  %s1 = inlined_call_operand.hbm [shape: f32[32,128], index: 1, kind: input, shape index: {}]
  %s2 = inlined_call_operand.vmem [shape: f32[1,128], index: 2, kind: input, shape index: {}]
  %s3 = inlined_call_operand.vmem [shape: f32[16,128], index: 3, kind: output, shape index: {}]
  %s4 = sld [smem:[#allocation0]]
  $region53: #{deberta_classification_head.1} parent=0
    _
  %s6 = ssub.s32 1, %s4
  %s7 = scalar_select 0, %s6, %s4
  $region1: #{deberta_classification_head.1} parent=0
    #allocation2 [shape = 'u8[8192]{0}', space=vmem, size = 0x2000, scoped, tag = 'input window, operand 0']
    #allocation3 [shape = 's32[2]{0}', space=sflag, size = 0x8, scoped, tag = 'scoped memory for deberta_classification_head.1']
    #allocation4 [shape = 'u8[16384]{0}', space=vmem, size = 0x4000, scoped, tag = 'input window, operand 1, single buffered']
    #allocation5 [shape = 's32[1]{0}', space=sflag, size = 0x4, scoped, tag = 'scoped memory for deberta_classification_head.1']
    %8 = vsyncpa [#allocation3], 0
    %s9 = scalar_lea.sflag [#allocation3], 1
    %10 = vsyncpa %s9, 0
    %11 = vsyncpa [#allocation5], 0
    loop: start=0, step=1, limit=4
    $region2: #{deberta_classification_head.1} parent=1 // loop_pre_header
      _
    $region3: #{deberta_classification_head.1} parent=1 // loop_header
      %s13 = sphi 0, %s17
      %p14 = scmp.ge.s32.totalorder %s13, 4
      %s23 = sphi 0, %s25
      %s26 = sphi 0, %s23
      %s27 = sphi 0, %s26
      %s43 = sphi 0, %s27
      %s47 = sphi 0, %s47
      %s49 = sphi 0, %s47
      %s50 = sphi 0, %s49
      %s64 = sphi 0, %s50
      %s68 = sphi 0, %s68
      %s70 = sphi 0, %s68
      %s71 = sphi 0, %s70
      %s85 = sphi 0, %s71
      %s91 = sphi 0, %s93
      %s94 = sphi 0, %s91
      %s95 = sphi 0, %s94
      %s111 = sphi 0, %s95
    $region4: #{deberta_classification_head.1} parent=1 // loop_header_branch
      %16 = sbr.rel (%p14) target = $region8
    $region5: #{deberta_classification_head.1} parent=1 // loop_body
      %s18 = ssub.s32 %s13, 1
      %s19 = ssub.s32 %s13, 2
      %s20 = sadd.s32 %s13, 1
      %s21 = ssub.s32 %s13, %s20
      %p22 = scmp.eq.s32.totalorder %s21, 0
      %s24 = sadd.s32 %s23, 1
      %s25 = scalar_select %p22, %s23, %s24
      %p28 = pneg %p22
      %p29 = scmp.eq.s32.totalorder %s13, 1
      %p30 = por %p28, %p29
      %p31 = scmp.ne.s32.totalorder %s23, %s26
      %p32 = scmp.eq.s32.totalorder %s13, 0
      %p33 = por %p31, %p32
      %p34 = scmp.ne.s32.totalorder %s23, %s26
      %p35 = scmp.eq.s32.totalorder %s18, 1
      %p36 = por %p34, %p35
      %p37 = scmp.ne.s32.totalorder %s26, %s27
      %p38 = scmp.eq.s32.totalorder %s18, 0
      %p39 = por %p37, %p38
      %p40 = scmp.ne.s32.totalorder %s26, %s27
      %p41 = scmp.eq.s32.totalorder %s19, 1
      %p42 = por %p40, %p41
      %p44 = scmp.ne.s32.totalorder %s27, %s43
      %p45 = scmp.eq.s32.totalorder %s19, 0
      %p46 = por %p44, %p45
      %s48 = sadd.s32 %s47, 1
      %p51 = scmp.eq.s32.totalorder %s13, 1
      %p52 = scmp.ne.s32.totalorder %s47, %s49
      %p53 = scmp.eq.s32.totalorder %s13, 0
      %p54 = por %p52, %p53
      %p55 = scmp.ne.s32.totalorder %s47, %s49
      %p56 = scmp.eq.s32.totalorder %s18, 1
      %p57 = por %p55, %p56
      %p58 = scmp.ne.s32.totalorder %s49, %s50
      %p59 = scmp.eq.s32.totalorder %s18, 0
      %p60 = por %p58, %p59
      %p61 = scmp.ne.s32.totalorder %s49, %s50
      %p62 = scmp.eq.s32.totalorder %s19, 1
      %p63 = por %p61, %p62
      %p65 = scmp.ne.s32.totalorder %s50, %s64
      %p66 = scmp.eq.s32.totalorder %s19, 0
      %p67 = por %p65, %p66
      %s69 = sadd.s32 %s68, 1
      %p72 = scmp.eq.s32.totalorder %s13, 1
      %p73 = scmp.ne.s32.totalorder %s68, %s70
      %p74 = scmp.eq.s32.totalorder %s13, 0
      %p75 = por %p73, %p74
      %p76 = scmp.ne.s32.totalorder %s68, %s70
      %p77 = scmp.eq.s32.totalorder %s18, 1
      %p78 = por %p76, %p77
      %p79 = scmp.ne.s32.totalorder %s70, %s71
      %p80 = scmp.eq.s32.totalorder %s18, 0
      %p81 = por %p79, %p80
      %p82 = scmp.ne.s32.totalorder %s70, %s71
      %p83 = scmp.eq.s32.totalorder %s19, 1
      %p84 = por %p82, %p83
      %p86 = scmp.ne.s32.totalorder %s71, %s85
      %p87 = scmp.eq.s32.totalorder %s19, 0
      %p88 = por %p86, %p87
      %s89 = ssub.s32 %s13, %s20
      %p90 = scmp.eq.s32.totalorder %s89, 0
      %s92 = sadd.s32 %s91, 1
      %s93 = scalar_select %p90, %s91, %s92
      %p96 = pneg %p90
      %p97 = scmp.eq.s32.totalorder %s13, 1
      %p98 = por %p96, %p97
      %p99 = scmp.ne.s32.totalorder %s91, %s94
      %p100 = scmp.eq.s32.totalorder %s13, 0
      %p101 = por %p99, %p100
      %p102 = scmp.ne.s32.totalorder %s91, %s94
      %p103 = scmp.eq.s32.totalorder %s18, 1
      %p104 = por %p102, %p103
      %p105 = scmp.ne.s32.totalorder %s94, %s95
      %p106 = scmp.eq.s32.totalorder %s18, 0
      %p107 = por %p105, %p106
      %p108 = scmp.ne.s32.totalorder %s94, %s95
      %p109 = scmp.eq.s32.totalorder %s19, 1
      %p110 = por %p108, %p109
      %p112 = scmp.ne.s32.totalorder %s95, %s111
      %p113 = scmp.eq.s32.totalorder %s19, 0
      %p114 = por %p112, %p113
      %p115 = scmp.le.s32.totalorder 1, %s13
      %p116 = scmp.lt.s32.totalorder %s13, 3
      %p117 = pnand %p115, %p116
      %p118 = pneg %p117
      // Predicated region
      $region9: #{deberta_classification_head.1} parent=5 // pred_check
        _
      $region10: #{deberta_classification_head.1} parent=5 // pred_check_branch
        %120 = sbr.rel (%p117) target = $region12
      $region11: #{deberta_classification_head.1} parent=5 // pred_region
        %s121 = ssub.s32 %s13, 1
        // Predicated region
        $region13: #{deberta_classification_head.1} parent=11 // pred_check
          %p122 = pneg %p60
        $region14: #{deberta_classification_head.1} parent=11 // pred_check_branch
          %124 = sbr.rel (%p122) target = $region16
        $region15: #{deberta_classification_head.1} parent=11 // pred_region
          %s126 = ssub.s32 512, 512
          %127 = vsyncadd [#allocation5], %s126
          %s128 = sshll.u32 [#allocation4], 4
          %s129 = int_to_ptr.vmem [resolvable:$true] %s128
          %134 = dma.hbm_to_vmem [thread:$0]  %s1, 512, %s129, [#allocation5], 128, 128, 8
        $region16: #{deberta_classification_head.1} parent=11 // pred_fallthru
          _
        // Predicated region
        $region17: #{deberta_classification_head.1} parent=11 // pred_check
          %p135 = pneg %p81
        $region18: #{deberta_classification_head.1} parent=11 // pred_check_branch
          %137 = sbr.rel (%p135) target = $region20
        $region19: #{deberta_classification_head.1} parent=11 // pred_region
          _
        $region20: #{deberta_classification_head.1} parent=11 // pred_fallthru
          _
      $region12: #{deberta_classification_head.1} parent=5 // pred_fallthru
        _
      %p138 = scmp.lt.s32.totalorder %s13, 2
      // Predicated region
      $region21: #{deberta_classification_head.1} parent=5 // pred_check
        %p139 = pneg %p138
      $region22: #{deberta_classification_head.1} parent=5 // pred_check_branch
        %141 = sbr.rel (%p139) target = $region24
      $region23: #{deberta_classification_head.1} parent=5 // pred_region
        // Predicated region
        $region25: #{deberta_classification_head.1} parent=23 // pred_check
          %p142 = pneg %p33
        $region26: #{deberta_classification_head.1} parent=23 // pred_check_branch
          %144 = sbr.rel (%p142) target = $region28
        $region27: #{deberta_classification_head.1} parent=23 // pred_region
          %s145 = sand.u32 %s23, 1
          %s146 = scalar_lea.sflag [#allocation3], %s145
          %s147 = sand.u32 %s23, 1
          %s148 = smul.addr %s147, 8
          %s149 = scalar_lea.vmem [#allocation2], %s148
          %s151 = ssub.s32 128, 128
          %152 = vsyncadd %s146, %s151
          %s153 = smul.addr %s13, 128
          %s154 = scalar_lea.hbm %s0, %s153
          %s156 = sshll.u32 %s149, 4
          %s157 = int_to_ptr.vmem [resolvable:$true] %s156
          %159 = dma.hbm_to_vmem [thread:$0]  %s154, 128, %s157, %s146
        $region28: #{deberta_classification_head.1} parent=23 // pred_fallthru
          _
      $region24: #{deberta_classification_head.1} parent=5 // pred_fallthru
        _
      %p160 = scmp.le.s32.totalorder 1, %s13
      %p161 = scmp.lt.s32.totalorder %s13, 3
      %p162 = pnand %p160, %p161
      %p163 = pneg %p162
      // Predicated region
      $region29: #{deberta_classification_head.1} parent=5 // pred_check
        _
      $region30: #{deberta_classification_head.1} parent=5 // pred_check_branch
        %165 = sbr.rel (%p162) target = $region32
      $region31: #{deberta_classification_head.1} parent=5 // pred_region
        %s166 = ssub.s32 %s13, 1
        %s167 = sand.u32 %s26, 1
        %s168 = scalar_lea.sflag [#allocation3], %s167
        %s169 = sand.u32 %s26, 1
        %s170 = smul.addr %s169, 8
        %s171 = scalar_lea.vmem [#allocation2], %s170
        // Predicated region
        $region33: #{deberta_classification_head.1} parent=31 // pred_check
          %p172 = pneg %p39
        $region34: #{deberta_classification_head.1} parent=31 // pred_check_branch
          %174 = sbr.rel (%p172) target = $region36
        $region35: #{deberta_classification_head.1} parent=31 // pred_region
          %175 = dma.done %s168, 128
        $region36: #{deberta_classification_head.1} parent=31 // pred_fallthru
          _
        // Predicated region
        $region37: #{deberta_classification_head.1} parent=31 // pred_check
          %p176 = pneg %p60
        $region38: #{deberta_classification_head.1} parent=31 // pred_check_branch
          %178 = sbr.rel (%p176) target = $region40
        $region39: #{deberta_classification_head.1} parent=31 // pred_region
          %179 = dma.done [#allocation5], 512
        $region40: #{deberta_classification_head.1} parent=31 // pred_fallthru
          _
        %s180 = sand.u32 %s26, 1
        %s181 = scalar_lea.sflag [#allocation3], %s180
        %s182 = sand.u32 %s26, 1
        %s183 = smul.addr %s182, 8
        %s184 = scalar_lea.vmem [#allocation2], %s183
        %p185 = pneg %p39
        %p186 = pneg %p36
        %p187 = pneg %p60
        %p188 = pneg %p57
        %p189 = pneg %p81
        %p190 = pneg %p78
        %p191 = pneg %p107
        %p192 = pneg %p104
        %p193 = scmp.lt.s32.totalorder %s18, 1
        %s194 = scalar_select %p193, %s18, 1
        %s195 = smul.addr %s194, 8
        %s196 = scalar_lea.vmem %s3, %s195
        %p197 = scmp.lt.s32.totalorder %s18, 1
        %s198 = scalar_select %p197, %s18, 1
        %s199 = smul.addr %s198, 8
        %s200 = scalar_lea.vmem %s3, %s199
        %v201 = vld [vmem:[%s171] sm:$0xff]
        %v202 = vld [vmem:[#allocation4] sm:$0xff]
        %v203 = vld [vmem:[#allocation4 + $0x8] sm:$0xff]
        %v204 = vld [vmem:[#allocation4 + $0x10] sm:$0xff]
        %v205 = vld [vmem:[#allocation4 + $0x18] sm:$0xff]
        %v206 = vld [vmem:[%s2] sm:$0x1]
        %v208 = vlaneseq
        %v209 = vshrl.u32 %v208, 7
        %v210 = vsub.s32 0, %v209
        %v211 = vrot.slane %v206, %v210
        %vm213 = vcmask 261120
        %v215 = vsel %vm213, %v201, 0
        %217 = vmatprep.subr.mxu0 0.0
        %218 = vmatpush1.msra.mxu0 %v202
        %219 = vmatprep.subr.mxu0 0.0
        %220 = vmatpush1.msra.mxu0 %v203
        %221 = vmatprep.subr.mxu0 0.0
        %222 = vmatpush1.msra.mxu0 %v204
        %223 = vmatprep.subr.mxu0 0.0
        %224 = vmatpush1.msra.mxu0 %v205
        %225 = vmatprep.subr.mxu0 0.0
        %226 = vmatpush1.msra.mxu0 0.0
        %227 = vmatprep.subr.mxu0 0.0
        %228 = vmatpush1.msra.mxu0 0.0
        %229 = vmatprep.subr.mxu0 0.0
        %230 = vmatpush1.msra.mxu0 0.0
        %231 = vmatprep.subr.mxu0 0.0
        %232 = vmatpush1.msra.mxu0 0.0
        %233 = vmatprep.subr.mxu0 0.0
        %234 = vmatpush1.msra.mxu0 0.0
        %235 = vmatprep.subr.mxu0 0.0
        %236 = vmatpush1.msra.mxu0 0.0
        %237 = vmatprep.subr.mxu0 0.0
        %238 = vmatpush1.msra.mxu0 0.0
        %239 = vmatprep.subr.mxu0 0.0
        %240 = vmatpush1.msra.mxu0 0.0
        %241 = vmatprep.subr.mxu0 0.0
        %242 = vmatpush1.msra.mxu0 0.0
        %243 = vmatprep.subr.mxu0 0.0
        %244 = vmatpush1.msra.mxu0 0.0
        %245 = vmatprep.subr.mxu0 0.0
        %246 = vmatpush1.msra.mxu0 0.0
        %247 = vmatprep.subr.mxu0 0.0
        %248 = vmatpush1.msra.mxu0 0.0
        %249 = vmatprep.subr.mxu0 0.0
        %250 = vmatpush1.msra.mxu0 0.0
        %251 = vmatprep.subr.mxu0 0.0
        %252 = vmatpush1.msra.mxu0 0.0
        %253 = vmatprep.subr.mxu0 0.0
        %254 = vmatpush1.msra.mxu0 0.0
        %255 = vmatprep.subr.mxu0 0.0
        %256 = vmatpush1.msra.mxu0 0.0
        %257 = vmatprep.subr.mxu0 0.0
        %258 = vmatpush1.msra.mxu0 0.0
        %259 = vmatprep.subr.mxu0 0.0
        %260 = vmatpush1.msra.mxu0 0.0
        %261 = vmatprep.subr.mxu0 0.0
        %262 = vmatpush1.msra.mxu0 0.0
        %263 = vmatprep.subr.mxu0 0.0
        %264 = vmatpush1.msra.mxu0 0.0
        %265 = vmatprep.subr.mxu0 0.0
        %266 = vmatpush1.msra.mxu0 0.0
        %267 = vmatprep.subr.mxu0 0.0
        %268 = vmatpush1.msra.mxu0 0.0
        %269 = vmatprep.subr.mxu0 0.0
        %270 = vmatpush1.msra.mxu0 0.0
        %271 = vmatprep.subr.mxu0 0.0
        %272 = vmatpush1.msra.mxu0 0.0
        %273 = vmatprep.subr.mxu0 0.0
        %274 = vmatpush1.msra.mxu0 0.0
        %275 = vmatprep.subr.mxu0 0.0
        %276 = vmatpush1.msra.mxu0 0.0
        %277 = vmatprep.subr.mxu0 0.0
        %278 = vmatpush1.msra.mxu0 0.0
        %279 = vmatprep.subr.mxu0 0.0
        %280 = vmatpush1.msra.mxu0 0.0
        %281 = vmatprep.mubr.f32.mxu0 0.0
        %282 = vmatmul.mubr.f32.gmra.mrb[0].mxu0 %v215
        %v283 = vpop.f32.mrb[0].mxu0
        %v284 = vadd.f32 %v211, %v283
        %v285 = vpop.f32.mrb[0].mxu0
        %286 = vdwg.mxu0
        %287 = vst [vmem:[%s200] sm:$0xff] %v284
        %p288 = scmp.lt.s32.totalorder %s18, 1
        %s289 = scalar_select %p288, %s18, 1
        %s290 = smul.addr %s289, 8
        %s291 = scalar_lea.vmem %s3, %s290
        // Predicated region
        $region41: #{deberta_classification_head.1} parent=31 // pred_check
          %p292 = pneg %p104
        $region42: #{deberta_classification_head.1} parent=31 // pred_check_branch
          %294 = sbr.rel (%p292) target = $region44
        $region43: #{deberta_classification_head.1} parent=31 // pred_region
          _
        $region44: #{deberta_classification_head.1} parent=31 // pred_fallthru
          _
      $region32: #{deberta_classification_head.1} parent=5 // pred_fallthru
        _
      %p295 = scmp.le.s32.totalorder 2, %s13
      // Predicated region
      $region45: #{deberta_classification_head.1} parent=5 // pred_check
        %p296 = pneg %p295
      $region46: #{deberta_classification_head.1} parent=5 // pred_check_branch
        %298 = sbr.rel (%p296) target = $region48
      $region47: #{deberta_classification_head.1} parent=5 // pred_region
        %s299 = ssub.s32 %s13, 2
        // Predicated region
        $region49: #{deberta_classification_head.1} parent=47 // pred_check
          %p300 = pneg %p110
        $region50: #{deberta_classification_head.1} parent=47 // pred_check_branch
          %302 = sbr.rel (%p300) target = $region52
        $region51: #{deberta_classification_head.1} parent=47 // pred_region
          %p303 = scmp.lt.s32.totalorder %s19, 1
          %s304 = scalar_select %p303, %s19, 1
          %s305 = smul.addr %s304, 8
          %s306 = scalar_lea.vmem %s3, %s305
        $region52: #{deberta_classification_head.1} parent=47 // pred_fallthru
          _
      $region48: #{deberta_classification_head.1} parent=5 // pred_fallthru
        _
    $region6: #{deberta_classification_head.1} parent=1 // loop_footer
      %s17 = sadd.s32 1, %s13
    $region7: #{deberta_classification_head.1} parent=1 // loop_footer_branch
      %12 = sbr.rel target = $region3
    $region8: #{deberta_classification_head.1} parent=1 // loop_exit
      _
    %307 = vsyncpa [#allocation3], 1
    %s308 = scalar_lea.sflag [#allocation3], 1
    %309 = vsyncpa %s308, 1
    %310 = vsyncpa [#allocation5], 1

</llo_original>
